<compile_context>
chip_gen: v7x
topology: tpu7x:2x2x1
jax: 0.10.0
libtpu: 0.0.40
codegen_flags: <defaults>
</compile_context>

<pallas_src>
import jax
import jax.numpy as jnp
from jax.experimental import pallas as pl
from jax.experimental.pallas import tpu as pltpu

IN_FEATURES = 30
OUT_FEATURES = 2
DEFAULT_BLOCK_ROWS = 8192        # ~16 MiB double-buffered (x + out, lane-padded)
_VMEM_LIMIT_BYTES = 48 << 20     # fits v5e/v6e (128 MiB) and v7x (64 MiB) physical


def _round_up(n, m):
    return ((n + m - 1) // m) * m


def _linear_kernel(x_ref, wt_ref, b_ref, o_ref):
    # x_ref:  [TB, IN]   -- one batch tile
    # wt_ref: [IN, OUT]  -- pre-transposed weight (grid-invariant)
    # b_ref:  [1, OUT]
    # o_ref:  [TB, OUT]
    y = jnp.dot(x_ref[...], wt_ref[...], preferred_element_type=jnp.float32)
    o_ref[...] = (y + b_ref[...]).astype(o_ref.dtype)


def logistic_regression_forward(
    x, weight, bias, *, block_rows=DEFAULT_BLOCK_ROWS, core_parallel=False
):
    """y = x @ weight.T + bias  (exact nn.Linear(30, 2) semantics)."""
    B = x.shape[0]
    if B == 0:
        return jnp.zeros((0, OUT_FEATURES), dtype=x.dtype)

    block_rows = _round_up(max(block_rows, 8), 8)
    # If the whole batch fits in one tile, use block == full dim (always legal,
    # even for non-multiple-of-8 B); otherwise tile with a multiple-of-8 TB and
    # let Pallas mask the partial last block (no wrapper-side jnp.pad).
    tb = B if B <= block_rows else block_rows
    grid = (pl.cdiv(B, tb),)

    wt = weight.T                           # [IN, OUT]; avoids in-kernel w.T per tile
    bias2d = bias.reshape(1, OUT_FEATURES)

    itemsize = jnp.dtype(x.dtype).itemsize
    w_itemsize = jnp.dtype(weight.dtype).itemsize
    cost = pl.CostEstimate(
        flops=2 * B * IN_FEATURES * OUT_FEATURES,
        transcendentals=0,
        bytes_accessed=(B * IN_FEATURES + B * OUT_FEATURES) * itemsize
        + (IN_FEATURES * OUT_FEATURES + OUT_FEATURES) * w_itemsize,
    )

    dim_sem = ((pltpu.CORE_PARALLEL if core_parallel else "parallel"),)

    out = pl.pallas_call(
        _linear_kernel,
        out_shape=jax.ShapeDtypeStruct((B, OUT_FEATURES), x.dtype),
        grid=grid,
        in_specs=[
            pl.BlockSpec((tb, IN_FEATURES), lambda i: (i, 0)),            # batch tile
            pl.BlockSpec((IN_FEATURES, OUT_FEATURES), lambda i: (0, 0)),  # constant W^T
            pl.BlockSpec((1, OUT_FEATURES), lambda i: (0, 0)),            # constant bias
        ],
        out_specs=pl.BlockSpec((tb, OUT_FEATURES), lambda i: (i, 0)),
        compiler_params=pltpu.CompilerParams(
            dimension_semantics=dim_sem,
            vmem_limit_bytes=_VMEM_LIMIT_BYTES,
        ),
        cost_estimate=cost,
    )(x, wt, bias2d)

    return out


if __name__ == "__main__":
    key = jax.random.PRNGKey(0)
    kx, kw, kb, kx2 = jax.random.split(key, 4)

    # Deterministic parameter init mimicking nn.Linear's uniform(-1/sqrt(fan_in), ...).
    bound = 1.0 / jnp.sqrt(jnp.float32(IN_FEATURES))
    weight = jax.random.uniform(
        kw, (OUT_FEATURES, IN_FEATURES), minval=-bound, maxval=bound, dtype=jnp.float32
    )
    bias = jax.random.uniform(
        kb, (OUT_FEATURES,), minval=-bound, maxval=bound, dtype=jnp.float32
    )

    # Small batch: single full block (tb == B).
    B = 8
    x = jax.random.normal(kx, (B, IN_FEATURES), dtype=jnp.float32)
    y = logistic_regression_forward(x, weight, bias)
    jax.block_until_ready(y)
    y_ref = x @ weight.T + bias
    assert y.shape == (B, OUT_FEATURES)
    assert jnp.allclose(y, y_ref, atol=1e-5, rtol=1e-5)

    # Ragged batch, multi-tile grid with a masked partial last block (no jnp.pad).
    B2 = 300
    x2 = jax.random.normal(kx2, (B2, IN_FEATURES), dtype=jnp.float32)
    y2 = logistic_regression_forward(x2, weight, bias, block_rows=128)
    jax.block_until_ready(y2)
    y2_ref = x2 @ weight.T + bias
    assert y2.shape == (B2, OUT_FEATURES)
    assert jnp.allclose(y2, y2_ref, atol=1e-5, rtol=1e-5)

    print("KERNEL_OK")
</pallas_src>

<mosaic_0001>
module attributes {stable_mosaic.version = 11 : i64} {
  func.func @_linear_kernel(%arg0: i32, %arg1: memref<8x30xf32, #tpu.memory_space<vmem>>, %arg2: memref<30x2xf32, #tpu.memory_space<vmem>>, %arg3: memref<1x2xf32, #tpu.memory_space<vmem>>, %arg4: memref<8x2xf32, #tpu.memory_space<vmem>>) attributes {dimension_semantics = [#tpu.dimension_semantics<parallel>], iteration_bounds = array<i64: 1>, scalar_prefetch = 0 : i64, scratch_operands = 0 : i64, tpu.core_type = #tpu.core_type<tc>, window_params = [{transform_indices = @transform_0, window_bounds = array<i64: 8, 30>}, {pipeline_mode = #tpu.pipeline_mode<synchronous>, transform_indices = @transform_1, window_bounds = array<i64: 30, 2>}, {pipeline_mode = #tpu.pipeline_mode<synchronous>, transform_indices = @transform_2, window_bounds = array<i64: 1, 2>}, {transform_indices = @transform_3, window_bounds = array<i64: 8, 2>}]} {
    %c0 = arith.constant 0 : index
    %c0_0 = arith.constant 0 : index
    %0 = vector.load %arg1[%c0, %c0_0] : memref<8x30xf32, #tpu.memory_space<vmem>>, vector<8x30xf32>
    %c0_1 = arith.constant 0 : index
    %c0_2 = arith.constant 0 : index
    %1 = vector.load %arg2[%c0_1, %c0_2] : memref<30x2xf32, #tpu.memory_space<vmem>>, vector<30x2xf32>
    %cst = arith.constant dense<0.000000e+00> : vector<8x2xf32>
    %2 = tpu.matmul %0, %1, %cst {dimension_numbers = #tpu.dot_dimension_numbers<[1], [0], [0], [1], [0, 0, 1, 1], [], []>} : vector<8x30xf32>, vector<30x2xf32>, vector<8x2xf32> -> vector<8x2xf32>
    %c0_3 = arith.constant 0 : index
    %c0_4 = arith.constant 0 : index
    %3 = vector.load %arg3[%c0_3, %c0_4] : memref<1x2xf32, #tpu.memory_space<vmem>>, vector<1x2xf32>
    %4 = vector.broadcast %3 : vector<1x2xf32> to vector<8x2xf32>
    %5 = arith.addf %2, %4 : vector<8x2xf32>
    %c0_5 = arith.constant 0 : index
    %c0_6 = arith.constant 0 : index
    %6 = vector.load %arg4[%c0_5, %c0_6] : memref<8x2xf32, #tpu.memory_space<vmem>>, vector<8x2xf32>
    tpu.vector_store %arg4[%c0_5, %c0_6], %5 {strides = array<i32>} : memref<8x2xf32, #tpu.memory_space<vmem>>, vector<8x2xf32>,
    return
  }
  func.func @transform_0(%arg0: i32) -> (i32, i32) {
    %c0_i32 = arith.constant 0 : i32
    %c0_i32_0 = arith.constant 0 : i32
    return %arg0, %c0_i32 : i32, i32
  }
  func.func @transform_1(%arg0: i32) -> (i32, i32) {
    %c0_i32 = arith.constant 0 : i32
    %c0_i32_0 = arith.constant 0 : i32
    %c0_i32_1 = arith.constant 0 : i32
    return %c0_i32, %c0_i32_0 : i32, i32
  }
  func.func @transform_2(%arg0: i32) -> (i32, i32) {
    %c0_i32 = arith.constant 0 : i32
    %c0_i32_0 = arith.constant 0 : i32
    %c0_i32_1 = arith.constant 0 : i32
    return %c0_i32, %c0_i32_0 : i32, i32
  }
  func.func @transform_3(%arg0: i32) -> (i32, i32) {
    %c0_i32 = arith.constant 0 : i32
    %c0_i32_0 = arith.constant 0 : i32
    return %arg0, %c0_i32 : i32, i32
  }
}

</mosaic_0001>

<llo_original>
// kernel: tpu_custom_call.1
$region0: #{tpu_custom_call.1}
  #allocation0 [shape = 'u32[]', space=smem, size = 0x4, offset = 0x4, fixed_abs, tag = 'smem constant byte address 0x4 - core index']
  #allocation1 [shape = 'u32[144,128]{1,0:T(1,128)}', space=vmem, size = 0x12000, scoped, tag = 'internal scratch']
  %s0 = inlined_call_operand.vmem [shape: f32[8,30], index: 0, kind: input, shape index: {}]
  %s1 = inlined_call_operand.vmem [shape: f32[30,2], index: 1, kind: input, shape index: {}]
  %s2 = inlined_call_operand.vmem [shape: f32[1,2], index: 2, kind: input, shape index: {}]
  %s3 = inlined_call_operand.vmem [shape: f32[8,2], index: 3, kind: output, shape index: {}]
  %s4 = sld [smem:[#allocation0]]
  $region22: #{tpu_custom_call.1} parent=0
    _
  %s6 = ssub.s32 1, %s4
  %s7 = scalar_select 0, %s6, %s4
  // Predicated region
  $region2: #{tpu_custom_call.1} parent=0 // pred_check
    _
  $region3: #{tpu_custom_call.1} parent=0 // pred_check_branch
    %9 = sbr.rel (0) target = $region5
  $region4: #{tpu_custom_call.1} parent=0 // pred_region
    _
  $region5: #{tpu_custom_call.1} parent=0 // pred_fallthru
    _
  // Predicated region
  $region6: #{tpu_custom_call.1} parent=0 // pred_check
    _
  $region7: #{tpu_custom_call.1} parent=0 // pred_check_branch
    %11 = sbr.rel (0) target = $region9
  $region8: #{tpu_custom_call.1} parent=0 // pred_region
    _
  $region9: #{tpu_custom_call.1} parent=0 // pred_fallthru
    _
  // Predicated region
  $region10: #{tpu_custom_call.1} parent=0 // pred_check
    _
  $region11: #{tpu_custom_call.1} parent=0 // pred_check_branch
    %13 = sbr.rel (0) target = $region13
  $region12: #{tpu_custom_call.1} parent=0 // pred_region
    _
  $region13: #{tpu_custom_call.1} parent=0 // pred_fallthru
    _
  %v14 = vld [vmem:[%s0] sm:$0xff]
  %v15 = vld [vmem:[%s1] sm:$0xff]
  %v16 = vld [vmem:[%s1 + $0x8] sm:$0xff]
  %v17 = vld [vmem:[%s1 + $0x10] sm:$0xff]
  %v18 = vld [vmem:[%s1 + $0x18] sm:$0x3f]
  %v19 = vld [vmem:[%s2] sm:$0x1]
  %v21 = vlaneseq
  %v22 = vshrl.u32 %v21, 7
  %v23 = vsub.s32 0, %v22
  %v24 = vrot.slane %v19, %v23
  %vm26 = vcmask 244736
  %v28 = vsel %vm26, %v14, 0
  %vm30 = vcmask 1045504
  %v32 = vsel %vm30, %v18, 0
  %34 = vmatprep.subr.mxu0 0.0
  %35 = vmatpush1.msra.mxu0 %v15
  %36 = vmatprep.subr.mxu0 0.0
  %37 = vmatpush1.msra.mxu0 %v16
  %38 = vmatprep.subr.mxu0 0.0
  %39 = vmatpush1.msra.mxu0 %v17
  %40 = vmatprep.subr.mxu0 0.0
  %41 = vmatpush1.msra.mxu0 %v32
  %42 = vmatprep.subr.mxu0 0.0
  %43 = vmatpush1.msra.mxu0 0.0
  %44 = vmatprep.subr.mxu0 0.0
  %45 = vmatpush1.msra.mxu0 0.0
  %46 = vmatprep.subr.mxu0 0.0
  %47 = vmatpush1.msra.mxu0 0.0
  %48 = vmatprep.subr.mxu0 0.0
  %49 = vmatpush1.msra.mxu0 0.0
  %50 = vmatprep.subr.mxu0 0.0
  %51 = vmatpush1.msra.mxu0 0.0
  %52 = vmatprep.subr.mxu0 0.0
  %53 = vmatpush1.msra.mxu0 0.0
  %54 = vmatprep.subr.mxu0 0.0
  %55 = vmatpush1.msra.mxu0 0.0
  %56 = vmatprep.subr.mxu0 0.0
  %57 = vmatpush1.msra.mxu0 0.0
  %58 = vmatprep.subr.mxu0 0.0
  %59 = vmatpush1.msra.mxu0 0.0
  %60 = vmatprep.subr.mxu0 0.0
  %61 = vmatpush1.msra.mxu0 0.0
  %62 = vmatprep.subr.mxu0 0.0
  %63 = vmatpush1.msra.mxu0 0.0
  %64 = vmatprep.subr.mxu0 0.0
  %65 = vmatpush1.msra.mxu0 0.0
  %66 = vmatprep.subr.mxu0 0.0
  %67 = vmatpush1.msra.mxu0 0.0
  %68 = vmatprep.subr.mxu0 0.0
  %69 = vmatpush1.msra.mxu0 0.0
  %70 = vmatprep.subr.mxu0 0.0
  %71 = vmatpush1.msra.mxu0 0.0
  %72 = vmatprep.subr.mxu0 0.0
  %73 = vmatpush1.msra.mxu0 0.0
  %74 = vmatprep.subr.mxu0 0.0
  %75 = vmatpush1.msra.mxu0 0.0
  %76 = vmatprep.subr.mxu0 0.0
  %77 = vmatpush1.msra.mxu0 0.0
  %78 = vmatprep.subr.mxu0 0.0
  %79 = vmatpush1.msra.mxu0 0.0
  %80 = vmatprep.subr.mxu0 0.0
  %81 = vmatpush1.msra.mxu0 0.0
  %82 = vmatprep.subr.mxu0 0.0
  %83 = vmatpush1.msra.mxu0 0.0
  %84 = vmatprep.subr.mxu0 0.0
  %85 = vmatpush1.msra.mxu0 0.0
  %86 = vmatprep.subr.mxu0 0.0
  %87 = vmatpush1.msra.mxu0 0.0
  %88 = vmatprep.subr.mxu0 0.0
  %89 = vmatpush1.msra.mxu0 0.0
  %90 = vmatprep.subr.mxu0 0.0
  %91 = vmatpush1.msra.mxu0 0.0
  %92 = vmatprep.subr.mxu0 0.0
  %93 = vmatpush1.msra.mxu0 0.0
  %94 = vmatprep.subr.mxu0 0.0
  %95 = vmatpush1.msra.mxu0 0.0
  %96 = vmatprep.subr.mxu0 0.0
  %97 = vmatpush1.msra.mxu0 0.0
  %98 = vmatprep.mubr.f32.mxu0 0.0
  %99 = vmatmul.mubr.f32.gmra.mrb[0].mxu0 %v28
  %v100 = vpop.f32.mrb[0].mxu0
  %v101 = vadd.f32 %v24, %v100
  %v102 = vpop.f32.mrb[0].mxu0
  %103 = vdwg.mxu0
  %vm104 = vcmask 15360
  %105 = vst.msk [vmem:[%s3] sm:$0xff] %vm104, %v101
  // Predicated region
  $region14: #{tpu_custom_call.1} parent=0 // pred_check
    _
  $region15: #{tpu_custom_call.1} parent=0 // pred_check_branch
    %107 = sbr.rel (0) target = $region17
  $region16: #{tpu_custom_call.1} parent=0 // pred_region
    _
  $region17: #{tpu_custom_call.1} parent=0 // pred_fallthru
    _
  // Predicated region
  $region18: #{tpu_custom_call.1} parent=0 // pred_check
    _
  $region19: #{tpu_custom_call.1} parent=0 // pred_check_branch
    %109 = sbr.rel (0) target = $region21
  $region20: #{tpu_custom_call.1} parent=0 // pred_region
    _
  $region21: #{tpu_custom_call.1} parent=0 // pred_fallthru
    _

</llo_original>
